<compile_context>
chip_gen: v6e
topology: v6e:2x2x1
jax: 0.10.0
libtpu: 0.0.40
codegen_flags: <defaults>
</compile_context>

<pallas_src>
import math
from functools import partial

import numpy as np
import jax
import jax.numpy as jnp
from jax.experimental import pallas as pl
from jax.experimental.pallas import tpu as pltpu


# ---------------------------------------------------------------------------
# Pallas kernels
# ---------------------------------------------------------------------------

def _posenc_kernel(x_ref, pe_ref, o_ref):
    # x_ref: (TB, L), pe_ref: (1, L) f32 — broadcast add over the row tile.
    o_ref[...] = (x_ref[...].astype(jnp.float32) + pe_ref[...]).astype(o_ref.dtype)


def _posenc_dropout_kernel(x_ref, pe_ref, o_ref, *, keep_threshold, inv_keep, seed):
    tb, L = x_ref.shape
    y = x_ref[...].astype(jnp.float32) + pe_ref[...]

    # Counter-based hash (splitmix32-style) of the *global* element index, so
    # tiles never repeat a mask and the result is independent of the tiling.
    row0 = pl.program_id(0) * tb
    rows = (jax.lax.broadcasted_iota(jnp.int32, (tb, L), 0) + row0).astype(jnp.uint32)
    cols = jax.lax.broadcasted_iota(jnp.int32, (tb, L), 1).astype(jnp.uint32)
    idx = rows * jnp.uint32(L) + cols
    h = idx * jnp.uint32(0x9E3779B9) + jnp.uint32(seed)
    h = (h ^ (h >> 16)) * jnp.uint32(0x7FEB352D)
    h = (h ^ (h >> 15)) * jnp.uint32(0x846CA68B)
    h = h ^ (h >> 16)
    # Compare on the top 24 bits as int32 (safe, unambiguous signedness).
    keep = (h >> 8).astype(jnp.int32) < keep_threshold

    # NOTE: the tail grid block also computes dropout on padded rows past B;
    # harmless — those stores are masked by Pallas.
    o_ref[...] = jnp.where(keep, y * inv_keep, 0.0).astype(o_ref.dtype)


# ---------------------------------------------------------------------------
# Chip-aware tiling helpers
# ---------------------------------------------------------------------------

def _chip_tuning():
    """(num_tensorcores, target_block_bytes, vmem_limit_bytes) per chip family."""
    try:
        kind = jax.devices()[0].device_kind.lower()
    except Exception:  # pragma: no cover — no device info (e.g. interpret)
        kind = ""
    if "v7" in kind:
        # 2 TCs, 64 MiB physical / 32 MiB scoped VMEM: ~4 MiB blocks
        # (2x in + 2x out ~= 16 MiB) keep well inside the scoped limit.
        return 2, 4 << 20, 32 << 20
    if "v6" in kind or "v5" in kind:
        # 1 TC, 128 MiB physical VMEM: go bigger to amortize per-step overhead.
        return 1, 8 << 20, 64 << 20
    # Unknown backend (incl. interpret mode): conservative defaults.
    return 1, 4 << 20, 32 << 20


def _row_tile(n_rows, row_bytes, num_cores, target_bytes):
    """Batch-row tile: multiple of 8, ~target_bytes per block, cdiv grid."""
    budget = max(8, (int(target_bytes) // max(int(row_bytes), 1)) // 8 * 8)
    if n_rows <= budget:
        if num_cores >= 2 and n_rows >= 16:
            # Fits in one block, but split into 2 'parallel' steps so both
            # TensorCores (v7x) get balanced work.  Round up to a multiple of 8.
            return -(-((n_rows + 1) // 2) // 8) * 8
        return n_rows            # single full-extent block (no artificial split)
    return budget


# ---------------------------------------------------------------------------
# pe construction + forward wrapper
# ---------------------------------------------------------------------------

def make_positional_encoding(d_model, max_len=24):
    """Build the sinusoidal buffer exactly like the PyTorch module __init__."""
    position = np.arange(max_len, dtype=np.float32)[:, None]
    div_term = np.exp(np.arange(0, d_model, 2, dtype=np.float32)
                      * (-math.log(10000.0) / d_model))
    pe = np.zeros((1, max_len, d_model), dtype=np.float32)
    pe[0, :, 0::2] = np.sin(position * div_term)
    pe[0, :, 1::2] = np.cos(position * div_term)
    return jnp.asarray(pe)


def positional_encoding_forward(x, pe, *, dropout_p=0.0, train=False, seed=0,
                                in_place=False):
    """x: (B, S, D); pe: (1, max_len, D). Returns dropout(x + pe[:, :S])."""
    B, S, D = x.shape
    L = S * D
    x2 = x.reshape(B, L)                                   # lane-dense view
    pe2 = pe[0, :S, :].astype(jnp.float32).reshape(1, L)   # f32 broadcast row slab

    num_cores, target_bytes, vmem_limit = _chip_tuning()
    tb = _row_tile(B, L * x.dtype.itemsize, num_cores, target_bytes)
    grid = (pl.cdiv(B, tb),)

    use_dropout = bool(train) and float(dropout_p) > 0.0
    if use_dropout:
        keep_prob = 1.0 - float(dropout_p)
        kernel = partial(_posenc_dropout_kernel,
                         keep_threshold=int(keep_prob * (1 << 24)),
                         inv_keep=float(1.0 / keep_prob),
                         seed=int(seed) & 0xFFFFFFFF)
    else:
        kernel = _posenc_kernel

    extra = {}
    if in_place:
        # Write the result in place over x2 (only beneficial when the caller
        # donates x; otherwise XLA inserts a defensive copy).
        extra["input_output_aliases"] = {0: 0}

    out = pl.pallas_call(
        kernel,
        out_shape=jax.ShapeDtypeStruct((B, L), x.dtype),
        grid=grid,
        in_specs=[pl.BlockSpec((tb, L), lambda i: (i, 0)),
                  # pe block == full extent of pe2; constant index -> revisited
                  # block, no per-step re-DMA.
                  pl.BlockSpec((1, L), lambda i: (0, 0))],
        out_specs=pl.BlockSpec((tb, L), lambda i: (i, 0)),
        compiler_params=pltpu.CompilerParams(
            dimension_semantics=("parallel",),
            vmem_limit_bytes=vmem_limit),
        **extra,
    )(x2, pe2)
    return out.reshape(B, S, D)


# ---------------------------------------------------------------------------
# Self-test
# ---------------------------------------------------------------------------

if __name__ == "__main__":
    key = jax.random.PRNGKey(0)
    batch, seq, d_model = 2, 8, 32
    max_len = 24

    x = jax.random.normal(key, (batch, seq, d_model), jnp.float32)
    pe = make_positional_encoding(d_model, max_len=max_len)

    # --- eval / p=0 path (the reference module's default behavior) ---
    fwd = jax.jit(partial(positional_encoding_forward, dropout_p=0.0, train=False))
    out = fwd(x, pe)
    jax.block_until_ready(out)

    ref = x + pe[:, :seq, :]
    np.testing.assert_allclose(np.asarray(out), np.asarray(ref),
                               atol=1e-6, rtol=1e-6)
    assert out.shape == x.shape and out.dtype == x.dtype

    # --- fused-dropout path (training, p=0.5): every element is either 0 or
    #     (x + pe) / keep_prob, and the keep fraction is ~ keep_prob ---
    fwd_drop = jax.jit(partial(positional_encoding_forward,
                               dropout_p=0.5, train=True, seed=1234))
    out_d = fwd_drop(x, pe)
    jax.block_until_ready(out_d)
    out_d = np.asarray(out_d)
    ref_np = np.asarray(ref)
    kept = np.abs(out_d) > 1e-8
    np.testing.assert_allclose(out_d[kept], 2.0 * ref_np[kept],
                               atol=1e-5, rtol=1e-5)
    frac = kept.mean()
    assert 0.2 < frac < 0.8, f"unexpected dropout keep fraction {frac}"

    print("KERNEL_OK")
</pallas_src>

<mosaic_0001>
module attributes {stable_mosaic.version = 11 : i64} {
  func.func @_posenc_kernel(%arg0: i32, %arg1: memref<2x256xf32, #tpu.memory_space<vmem>>, %arg2: memref<1x256xf32, #tpu.memory_space<vmem>>, %arg3: memref<2x256xf32, #tpu.memory_space<vmem>>) attributes {dimension_semantics = [#tpu.dimension_semantics<parallel>], iteration_bounds = array<i64: 1>, scalar_prefetch = 0 : i64, scratch_operands = 0 : i64, tpu.core_type = #tpu.core_type<tc>, window_params = [{transform_indices = @transform_0, window_bounds = array<i64: 2, 256>}, {pipeline_mode = #tpu.pipeline_mode<synchronous>, transform_indices = @transform_1, window_bounds = array<i64: 1, 256>}, {transform_indices = @transform_2, window_bounds = array<i64: 2, 256>}]} {
    %c0 = arith.constant 0 : index
    %c0_0 = arith.constant 0 : index
    %0 = vector.load %arg1[%c0, %c0_0] : memref<2x256xf32, #tpu.memory_space<vmem>>, vector<2x256xf32>
    %c0_1 = arith.constant 0 : index
    %c0_2 = arith.constant 0 : index
    %1 = vector.load %arg2[%c0_1, %c0_2] : memref<1x256xf32, #tpu.memory_space<vmem>>, vector<1x256xf32>
    %2 = vector.broadcast %1 : vector<1x256xf32> to vector<2x256xf32>
    %3 = arith.addf %0, %2 : vector<2x256xf32>
    %c0_3 = arith.constant 0 : index
    %c0_4 = arith.constant 0 : index
    %4 = vector.load %arg3[%c0_3, %c0_4] : memref<2x256xf32, #tpu.memory_space<vmem>>, vector<2x256xf32>
    tpu.vector_store %arg3[%c0_3, %c0_4], %3 {strides = array<i32>} : memref<2x256xf32, #tpu.memory_space<vmem>>, vector<2x256xf32>,
    return
  }
  func.func @transform_0(%arg0: i32) -> (i32, i32) {
    %c0_i32 = arith.constant 0 : i32
    %c0_i32_0 = arith.constant 0 : i32
    return %arg0, %c0_i32 : i32, i32
  }
  func.func @transform_1(%arg0: i32) -> (i32, i32) {
    %c0_i32 = arith.constant 0 : i32
    %c0_i32_0 = arith.constant 0 : i32
    %c0_i32_1 = arith.constant 0 : i32
    return %c0_i32, %c0_i32_0 : i32, i32
  }
  func.func @transform_2(%arg0: i32) -> (i32, i32) {
    %c0_i32 = arith.constant 0 : i32
    %c0_i32_0 = arith.constant 0 : i32
    return %arg0, %c0_i32 : i32, i32
  }
}

</mosaic_0001>

<llo_original>
// kernel: squeeze.1
$region0: #{squeeze.1}
  %s0 = inlined_call_operand.vmem [shape: f32[1,8,32], index: 0, kind: input, shape index: {}]
  %s1 = inlined_call_operand.vmem [shape: f32[1,256], index: 1, kind: output, shape index: {}]
  $region1: #{squeeze.1} parent=0
    #allocation0 [shape = 'u8[8192]{0}', space=vmem, size = 0x2000, scoped, tag = 'scoped mem for output reshape']
    %s2 = smov 3
    %v3 = vld [vmem:[%s0] ss:$4 sm:%s2]
    %vm4 = vcmask 261120
    %5 = vst.msk [vmem:[#allocation0] ss:$8 sm:$0x3] %vm4, %v3
    %s6 = scalar_lea.vmem %s0, 3
    %s7 = smov 3
    %v8 = vld [vmem:[%s6] ss:$4 sm:%s7]
    %9 = vrot.lane.b32.xlu0 %v8, 96
    %v10 = vpop.permute.xlu0 %9
    %vm11 = vcmask 1048320
    %12 = vst.msk [vmem:[#allocation0] ss:$8 sm:$0x3] %vm11, %v10
    %s13 = scalar_lea.vmem %s0, 2
    %s14 = smov 3
    %v15 = vld [vmem:[%s13] ss:$4 sm:%s14]
    %16 = vrot.lane.b32.xlu0 %v15, 64
    %v17 = vpop.permute.xlu0 %16
    %vm18 = vcmask 785920
    %19 = vst.msk [vmem:[#allocation0] ss:$8 sm:$0x3] %vm18, %v17
    %s20 = scalar_lea.vmem %s0, 1
    %s21 = smov 3
    %v22 = vld [vmem:[%s20] ss:$4 sm:%s21]
    %23 = vrot.lane.b32.xlu0 %v22, 32
    %v24 = vpop.permute.xlu0 %23
    %vm25 = vcmask 523520
    %26 = vst.msk [vmem:[#allocation0] ss:$8 sm:$0x3] %vm25, %v24
    %s28 = sshll.u32 1, 1
    %s29 = ssub.s32 %s28, 1
    %v31 = vld [vmem:[#allocation0] sm:%s29]
    %s32 = sshll.u32 1, 1
    %s33 = ssub.s32 %s32, 1
    %34 = vst [vmem:[%s1] sm:%s33] %v31
    %s35 = scalar_lea.vmem [#allocation0], 8
    %v36 = vld [vmem:[%s35] sm:%s29]
    %s37 = sshll.u32 1, 1
    %s38 = ssub.s32 %s37, 1
    %s39 = scalar_lea.vmem %s1, 1
    %40 = vst [vmem:[%s39] sm:%s38] %v36

// kernel: positional_encoding_forward.1
$region0: #{positional_encoding_forward.1}
  #allocation0 [shape = 'u32[]', space=smem, size = 0x4, offset = 0x4, fixed_abs, tag = 'smem constant byte address 0x4 - core index']
  #allocation1 [shape = 'u32[144,128]{1,0:T(1,128)}', space=vmem, size = 0x12000, scoped, tag = 'internal scratch']
  %s0 = inlined_call_operand.vmem [shape: f32[2,256], index: 0, kind: input, shape index: {}]
  %s1 = inlined_call_operand.vmem [shape: f32[1,256], index: 1, kind: input, shape index: {}]
  %s2 = inlined_call_operand.vmem [shape: f32[2,256], index: 2, kind: output, shape index: {}]
  %s3 = sld [smem:[#allocation0]]
  $region18: #{positional_encoding_forward.1} parent=0
    _
  %s5 = ssub.s32 1, %s3
  %s6 = scalar_select 0, %s5, %s3
  // Predicated region
  $region2: #{positional_encoding_forward.1} parent=0 // pred_check
    _
  $region3: #{positional_encoding_forward.1} parent=0 // pred_check_branch
    %8 = sbr.rel (0) target = $region5
  $region4: #{positional_encoding_forward.1} parent=0 // pred_region
    _
  $region5: #{positional_encoding_forward.1} parent=0 // pred_fallthru
    _
  // Predicated region
  $region6: #{positional_encoding_forward.1} parent=0 // pred_check
    _
  $region7: #{positional_encoding_forward.1} parent=0 // pred_check_branch
    %10 = sbr.rel (0) target = $region9
  $region8: #{positional_encoding_forward.1} parent=0 // pred_region
    _
  $region9: #{positional_encoding_forward.1} parent=0 // pred_fallthru
    _
  %v11 = vld [vmem:[%s0] sm:$0xf]
  %v12 = vld [vmem:[%s1] sm:$0x3]
  %v14 = vlaneseq
  %v15 = vshrl.u32 %v14, 7
  %v16 = vsub.s32 0, %v15
  %v17 = vrot.slane %v12, %v16
  %v18 = vlaneseq
  %v19 = vshrl.u32 %v18, 7
  %v20 = vsub.s32 1, %v19
  %v21 = vrot.slane %v12, %v20
  %v22 = vcombine.low %v17, %v21
  %v24 = vunpack.c.l.s4 1983009808
  %v25 = vunpack.c.0.s8 %v24
  %v26 = vlaneseq
  %v27 = vshrl.u32 %v26, 7
  %v28 = vsub.s32 %v25, %v27
  %v29 = vrot.slane %v22, %v28
  %v31 = vadd.f32 %v11, %v29
  %32 = vst [vmem:[%s2] sm:$0xf] %v31
  // Predicated region
  $region10: #{positional_encoding_forward.1} parent=0 // pred_check
    _
  $region11: #{positional_encoding_forward.1} parent=0 // pred_check_branch
    %34 = sbr.rel (0) target = $region13
  $region12: #{positional_encoding_forward.1} parent=0 // pred_region
    _
  $region13: #{positional_encoding_forward.1} parent=0 // pred_fallthru
    _
  // Predicated region
  $region14: #{positional_encoding_forward.1} parent=0 // pred_check
    _
  $region15: #{positional_encoding_forward.1} parent=0 // pred_check_branch
    %36 = sbr.rel (0) target = $region17
  $region16: #{positional_encoding_forward.1} parent=0 // pred_region
    _
  $region17: #{positional_encoding_forward.1} parent=0 // pred_fallthru
    _

</llo_original>
